<compile_context>
chip_gen: v7x
topology: tpu7x:2x2x1
jax: 0.10.0
libtpu: 0.0.40
codegen_flags: <defaults>
</compile_context>

<pallas_src>
import numpy as np
import jax
import jax.numpy as jnp
from jax.experimental import pallas as pl
from jax.experimental.pallas import tpu as pltpu


def make_student_kernel(D, M, L, tile_n=1024):
    DD = D * D
    scale = np.float32(1.0 / (np.sqrt(M) * np.sqrt(L * D)))

    # ---- kernel 1: s = scale * (V @ U), computed once per forward ----------
    def s_kernel(v_ref, u_ref, s_ref):
        s_ref[...] = jnp.dot(v_ref[...], u_ref[...],
                             preferred_element_type=jnp.float32) * scale

    # ---- kernel 2: per-batch-tile contraction as one MXU matvec ------------
    def contract_kernel(x_ref, s_ref, o_ref):
        o_ref[...] = jnp.dot(x_ref[...], s_ref[...],
                             preferred_element_type=jnp.float32)

    def run(fc1V, fc1U, x):
        N = x.shape[0]

        # S (scale folded in) -- a single tiny ungridded pallas_call.
        S = pl.pallas_call(
            s_kernel,
            out_shape=jax.ShapeDtypeStruct((D, D), jnp.float32),
            in_specs=[pl.BlockSpec((D, M), lambda: (0, 0)),
                      pl.BlockSpec((M, D), lambda: (0, 0))],
            out_specs=pl.BlockSpec((D, D), lambda: (0, 0)),
        )(fc1V, fc1U)
        s_flat = S.reshape(DD, 1)                # layout plumbing only

        x_flat = x.reshape(N, DD)                # lane-dense contraction axis
        tn = min(tile_n, N)
        n_blocks = pl.cdiv(N, tn)
        n_pad = n_blocks * tn
        if n_pad != N:                           # zero rows contribute zero output
            x_flat = jnp.pad(x_flat, ((0, n_pad - N), (0, 0)))

        out = pl.pallas_call(
            contract_kernel,
            out_shape=jax.ShapeDtypeStruct((n_pad, 1), jnp.float32),
            grid=(n_blocks,),
            in_specs=[
                pl.BlockSpec((tn, DD), lambda n: (n, 0)),     # streamed over N
                pl.BlockSpec((DD, 1), lambda n: (0, 0)),      # resident, 1 KiB
            ],
            out_specs=pl.BlockSpec((tn, 1), lambda n: (n, 0)),
            compiler_params=pltpu.CompilerParams(
                dimension_semantics=("parallel",)),
        )(x_flat, s_flat)
        return out[:N, 0]                        # (N,), matches einsum('ij,nij')

    return run


if __name__ == "__main__":
    # Small shapes consistent with the module.
    D, M, L = 16, 32, 4
    N = 10                     # small batch; tile_n=8 exercises grid + padding

    key = jax.random.PRNGKey(0)
    k_u, k_v, k_x = jax.random.split(key, 3)

    # Deterministic parameter init matching torch.normal(0, 1e-4, shape).
    fc1U = (1e-4 * jax.random.normal(k_u, (M, D))).astype(jnp.float32)
    fc1V = (1e-4 * jax.random.normal(k_v, (D, M))).astype(jnp.float32)
    x = jax.random.normal(k_x, (N, D, D)).astype(jnp.float32)

    student = make_student_kernel(D, M, L, tile_n=8)
    out = jax.block_until_ready(student(fc1V, fc1U, x))
    assert out.shape == (N,)

    # Float64 host reference; tolerance accommodates the MXU's f32 matmul
    # pass decomposition (outputs are O(1e-8) because weights are ~1e-4).
    S_ref = np.asarray(fc1V, dtype=np.float64) @ np.asarray(fc1U, dtype=np.float64)
    ref = np.einsum('ij,nij->n', S_ref, np.asarray(x, dtype=np.float64))
    ref = ref / np.sqrt(M) / np.sqrt(L * D)
    np.testing.assert_allclose(np.asarray(out), ref, rtol=5e-3, atol=1e-10)

    print("KERNEL_OK")
</pallas_src>

<mosaic_0001>
module attributes {stable_mosaic.version = 11 : i64} {
  func.func @s_kernel(%arg0: memref<16x32xf32, #tpu.memory_space<vmem>>, %arg1: memref<32x16xf32, #tpu.memory_space<vmem>>, %arg2: memref<16x16xf32, #tpu.memory_space<vmem>>) attributes {dimension_semantics = [], scalar_prefetch = 0 : i64, scratch_operands = 0 : i64, tpu.core_type = #tpu.core_type<tc>} {
    %c0 = arith.constant 0 : index
    %c0_0 = arith.constant 0 : index
    %0 = vector.load %arg0[%c0, %c0_0] : memref<16x32xf32, #tpu.memory_space<vmem>>, vector<16x32xf32>
    %c0_1 = arith.constant 0 : index
    %c0_2 = arith.constant 0 : index
    %1 = vector.load %arg1[%c0_1, %c0_2] : memref<32x16xf32, #tpu.memory_space<vmem>>, vector<32x16xf32>
    %cst = arith.constant dense<0.000000e+00> : vector<16x16xf32>
    %2 = tpu.matmul %0, %1, %cst {dimension_numbers = #tpu.dot_dimension_numbers<[1], [0], [0], [1], [0, 0, 1, 1], [], []>} : vector<16x32xf32>, vector<32x16xf32>, vector<16x16xf32> -> vector<16x16xf32>
    %cst_3 = arith.constant 0.0220970865 : f32
    %3 = vector.broadcast %cst_3 : f32 to vector<16x16xf32>
    %4 = arith.mulf %2, %3 : vector<16x16xf32>
    %c0_4 = arith.constant 0 : index
    %c0_5 = arith.constant 0 : index
    %5 = vector.load %arg2[%c0_4, %c0_5] : memref<16x16xf32, #tpu.memory_space<vmem>>, vector<16x16xf32>
    tpu.vector_store %arg2[%c0_4, %c0_5], %4 {strides = array<i32>} : memref<16x16xf32, #tpu.memory_space<vmem>>, vector<16x16xf32>,
    return
  }
}

</mosaic_0001>

<llo_original>
// kernel: tpu_custom_call.1
$region0: #{tpu_custom_call.1}
  #allocation0 [shape = 'u32[]', space=smem, size = 0x4, offset = 0x4, fixed_abs, tag = 'smem constant byte address 0x4 - core index']
  #allocation1 [shape = 'u32[144,128]{1,0:T(1,128)}', space=vmem, size = 0x12000, scoped, tag = 'internal scratch']
  %s0 = inlined_call_operand.vmem [shape: f32[16,32], index: 0, kind: input, shape index: {}]
  %s1 = inlined_call_operand.vmem [shape: f32[32,16], index: 1, kind: input, shape index: {}]
  %s2 = inlined_call_operand.hbm [shape: f32[16,16], index: 2, kind: output, shape index: {}]
  %s3 = sld [smem:[#allocation0]]
  $region18: #{tpu_custom_call.1} parent=0
    _
  %s5 = ssub.s32 1, %s3
  %s6 = scalar_select 0, %s5, %s3
  $region1: #{tpu_custom_call.1} parent=0
    #allocation2 [shape = 'u8[8192]{0}', space=vmem, size = 0x2000, scoped, tag = 'output window, operand 0, single buffered']
    #allocation3 [shape = 's32[1]{0}', space=sflag, size = 0x4, scoped, tag = 'scoped memory for tpu_custom_call.1']
    %7 = vsyncpa [#allocation3], 0
    // Predicated region
    $region2: #{tpu_custom_call.1} parent=1 // pred_check
      _
    $region3: #{tpu_custom_call.1} parent=1 // pred_check_branch
      %9 = sbr.rel (0) target = $region5
    $region4: #{tpu_custom_call.1} parent=1 // pred_region
      _
    $region5: #{tpu_custom_call.1} parent=1 // pred_fallthru
      _
    // Predicated region
    $region6: #{tpu_custom_call.1} parent=1 // pred_check
      _
    $region7: #{tpu_custom_call.1} parent=1 // pred_check_branch
      %11 = sbr.rel (0) target = $region9
    $region8: #{tpu_custom_call.1} parent=1 // pred_region
      _
    $region9: #{tpu_custom_call.1} parent=1 // pred_fallthru
      _
    %v12 = vld [vmem:[%s0] sm:$0xff]
    %v13 = vld [vmem:[%s0 + $0x8] sm:$0xff]
    %v14 = vld [vmem:[%s1] sm:$0xff]
    %v15 = vld [vmem:[%s1 + $0x8] sm:$0xff]
    %v16 = vld [vmem:[%s1 + $0x10] sm:$0xff]
    %v17 = vld [vmem:[%s1 + $0x18] sm:$0xff]
    %vm18 = vcmask 261120
    %v20 = vsel %vm18, %v12, 0
    %v23 = vsel %vm18, %v13, 0
    %25 = vmatprep.subr.mxu0 0.0
    %26 = vmatpush1.msra.mxu0 %v14
    %27 = vmatprep.subr.mxu0 0.0
    %28 = vmatpush1.msra.mxu0 %v15
    %29 = vmatprep.subr.mxu0 0.0
    %30 = vmatpush1.msra.mxu0 %v16
    %31 = vmatprep.subr.mxu0 0.0
    %32 = vmatpush1.msra.mxu0 %v17
    %33 = vmatprep.subr.mxu0 0.0
    %34 = vmatpush1.msra.mxu0 0.0
    %35 = vmatprep.subr.mxu0 0.0
    %36 = vmatpush1.msra.mxu0 0.0
    %37 = vmatprep.subr.mxu0 0.0
    %38 = vmatpush1.msra.mxu0 0.0
    %39 = vmatprep.subr.mxu0 0.0
    %40 = vmatpush1.msra.mxu0 0.0
    %41 = vmatprep.subr.mxu0 0.0
    %42 = vmatpush1.msra.mxu0 0.0
    %43 = vmatprep.subr.mxu0 0.0
    %44 = vmatpush1.msra.mxu0 0.0
    %45 = vmatprep.subr.mxu0 0.0
    %46 = vmatpush1.msra.mxu0 0.0
    %47 = vmatprep.subr.mxu0 0.0
    %48 = vmatpush1.msra.mxu0 0.0
    %49 = vmatprep.subr.mxu0 0.0
    %50 = vmatpush1.msra.mxu0 0.0
    %51 = vmatprep.subr.mxu0 0.0
    %52 = vmatpush1.msra.mxu0 0.0
    %53 = vmatprep.subr.mxu0 0.0
    %54 = vmatpush1.msra.mxu0 0.0
    %55 = vmatprep.subr.mxu0 0.0
    %56 = vmatpush1.msra.mxu0 0.0
    %57 = vmatprep.subr.mxu0 0.0
    %58 = vmatpush1.msra.mxu0 0.0
    %59 = vmatprep.subr.mxu0 0.0
    %60 = vmatpush1.msra.mxu0 0.0
    %61 = vmatprep.subr.mxu0 0.0
    %62 = vmatpush1.msra.mxu0 0.0
    %63 = vmatprep.subr.mxu0 0.0
    %64 = vmatpush1.msra.mxu0 0.0
    %65 = vmatprep.subr.mxu0 0.0
    %66 = vmatpush1.msra.mxu0 0.0
    %67 = vmatprep.subr.mxu0 0.0
    %68 = vmatpush1.msra.mxu0 0.0
    %69 = vmatprep.subr.mxu0 0.0
    %70 = vmatpush1.msra.mxu0 0.0
    %71 = vmatprep.subr.mxu0 0.0
    %72 = vmatpush1.msra.mxu0 0.0
    %73 = vmatprep.subr.mxu0 0.0
    %74 = vmatpush1.msra.mxu0 0.0
    %75 = vmatprep.subr.mxu0 0.0
    %76 = vmatpush1.msra.mxu0 0.0
    %77 = vmatprep.subr.mxu0 0.0
    %78 = vmatpush1.msra.mxu0 0.0
    %79 = vmatprep.subr.mxu0 0.0
    %80 = vmatpush1.msra.mxu0 0.0
    %81 = vmatprep.subr.mxu0 0.0
    %82 = vmatpush1.msra.mxu0 0.0
    %83 = vmatprep.subr.mxu0 0.0
    %84 = vmatpush1.msra.mxu0 0.0
    %85 = vmatprep.subr.mxu0 0.0
    %86 = vmatpush1.msra.mxu0 0.0
    %87 = vmatprep.subr.mxu0 0.0
    %88 = vmatpush1.msra.mxu0 0.0
    %89 = vmatprep.mubr.f32.mxu0 0.0
    %90 = vmatmul.mubr.f32.gmra.mrb[0].mxu0 %v20
    %v91 = vpop.f32.mrb[0].mxu0
    %v92 = vadd.f32 0.0, %v91
    %v93 = vpop.f32.mrb[0].mxu0
    %94 = vmatprep.mubr.f32.mxu0 0.0
    %95 = vmatmul.mubr.f32.gmra.mrb[0].mxu0 %v23
    %v96 = vpop.f32.mrb[0].mxu0
    %v97 = vadd.f32 0.0, %v96
    %v98 = vpop.f32.mrb[0].mxu0
    %99 = vdwg.mxu0
    %v100 = vmul.f32 %v92, 0.022097087
    %v101 = vmul.f32 %v97, 0.022097087
    %vm102 = vcmask 130048
    %103 = vst.msk [vmem:[#allocation2] sm:$0xff] %vm102, %v100
    %104 = vst.msk [vmem:[#allocation2 + $0x8] sm:$0xff] %vm102, %v101
    // Predicated region
    $region10: #{tpu_custom_call.1} parent=1 // pred_check
      _
    $region11: #{tpu_custom_call.1} parent=1 // pred_check_branch
      %106 = sbr.rel (0) target = $region13
    $region12: #{tpu_custom_call.1} parent=1 // pred_region
      %s108 = ssub.s32 256, 256
      %109 = vsyncadd [#allocation3], %s108
      %s110 = sshll.u32 [#allocation2], 4
      %s111 = int_to_ptr.vmem [resolvable:$true] %s110
      %116 = dma.vmem_to_hbm [thread:$0]  %s111, 256, %s2, [#allocation3], 128, 128, 8
    $region13: #{tpu_custom_call.1} parent=1 // pred_fallthru
      _
    // Predicated region
    $region14: #{tpu_custom_call.1} parent=1 // pred_check
      _
    $region15: #{tpu_custom_call.1} parent=1 // pred_check_branch
      %118 = sbr.rel (0) target = $region17
    $region16: #{tpu_custom_call.1} parent=1 // pred_region
      %119 = dma.done [#allocation3], 256
    $region17: #{tpu_custom_call.1} parent=1 // pred_fallthru
      _
    %120 = vsyncpa [#allocation3], 1

</llo_original>
